<compile_context>
chip_gen: v7x
topology: tpu7x:2x2x1
jax: 0.10.0
libtpu: 0.0.40
codegen_flags: <defaults>
</compile_context>

<pallas_src>
import functools

import jax
import jax.numpy as jnp
from jax import lax
from jax.experimental import pallas as pl
from jax.experimental.pallas import tpu as pltpu

# ----------------------------------------------------------------------------
# Synthetic (small) dimensions consistent with the module's forward signature.
# ----------------------------------------------------------------------------
TOTAL_DIM = 8      # channels of x (hit-object signal dims)
AUDIO_DIM = 8      # channels of a (audio features)
CONTEXT_DIM = 8    # per-sample context vector dim
TIME_DIM = 8       # sinusoidal timestep-embedding dim
SEQ_LEN = 128      # sequence length n
BATCH = 2

TRAIN_TIMESTEPS = 1000
BETA_START, BETA_END = 1e-4, 2e-2      # diffusers DDIMScheduler 'linear' defaults
COND_DROP_PROB = 0.5

# Lane-tile cap: 64K lanes -> 2 MiB per f32 input block; 3 streams double
# buffered + the f32 accumulator scratch stay well inside the 32 MiB scoped
# VMEM we request (v5e/v6e: 128 MiB physical, v7x: 64 MiB physical).
MAX_LANE_TILE = 64 * 1024
VMEM_LIMIT_BYTES = 32 * 1024 * 1024


# ----------------------------------------------------------------------------
# Kernel: add_noise + surrogate denoiser + masked squared-error accumulation.
# Grid = (batch, lane_tiles); one (C, tile) slab of the native layout per step.
# ----------------------------------------------------------------------------
def _osu_fusion_loss_kernel(
    # --- scalar prefetch (SMEM) ---
    orig_len_ref,    # (B,)  int32  valid sequence length per sample
    sqrt_acp_ref,    # (B,)  f32    sqrt(alphas_cumprod[t_b])
    sqrt_1m_ref,     # (B,)  f32    sqrt(1 - alphas_cumprod[t_b])
    # --- VMEM inputs ---
    x_ref,           # (TOTAL_DIM, T) f32   native layout, batch squeezed
    noise_ref,       # (TOTAL_DIM, T) f32
    a_ref,           # (AUDIO_DIM, T) f32
    bias_ref,        # (TOTAL_DIM, 1) f32   per-sample conditioning bias column
    wx_ref,          # (TOTAL_DIM, TOTAL_DIM) bf16
    wa_ref,          # (TOTAL_DIM, AUDIO_DIM) bf16
    # --- output ---
    loss_ref,        # (1, 1) f32
    # --- scratch ---
    acc_ref,         # (TOTAL_DIM, T) f32  running elementwise sq-err accumulator
):
    b = pl.program_id(0)
    i = pl.program_id(1)

    @pl.when(jnp.logical_and(b == 0, i == 0))
    def _init():
        acc_ref[...] = jnp.zeros_like(acc_ref)

    sqrt_acp = sqrt_acp_ref[b]        # f32 scalars from SMEM
    sqrt_1m_acp = sqrt_1m_ref[b]
    olen = orig_len_ref[b]            # int32 scalar

    x = x_ref[...]                    # f32 (C, T)
    noise = noise_ref[...]            # f32 (C, T)

    # --- DDIMScheduler.add_noise (all-f32 elementwise; v5e VPU has no bf16) --
    x_noisy = sqrt_acp * x + sqrt_1m_acp * noise

    # --- surrogate denoiser: two tiny MXU dots, bf16 operands / f32 acc ------
    pred = jnp.dot(wx_ref[...], x_noisy.astype(jnp.bfloat16),
                   preferred_element_type=jnp.float32)
    pred = pred + jnp.dot(wa_ref[...], a_ref[...].astype(jnp.bfloat16),
                          preferred_element_type=jnp.float32)
    pred = pred + bias_ref[...]       # (C, 1) broadcasts over lanes

    # --- masked squared error, accumulated elementwise into VMEM scratch -----
    diff = pred - noise
    sq = diff * diff

    tile = x_ref.shape[1]             # static lane-tile width
    pos = i * tile + lax.broadcasted_iota(jnp.int32, sq.shape, 1)
    # jnp.where (not a multiply) so ragged-edge / padded-lane garbage can never
    # leak NaNs into the accumulator.
    acc_ref[...] += jnp.where(pos < olen, sq, 0.0)

    @pl.when(jnp.logical_and(b == pl.num_programs(0) - 1,
                             i == pl.num_programs(1) - 1))
    def _finalize():
        loss_ref[...] = jnp.sum(acc_ref[...]).reshape(1, 1)


# ----------------------------------------------------------------------------
# pallas_call construction (cached per (batch, seq_len)).
# ----------------------------------------------------------------------------
def _pick_lane_tile(n: int) -> int:
    if n <= MAX_LANE_TILE:
        return n                      # single lane step, full-extent block
    return MAX_LANE_TILE              # multiple of 128; ragged edge masked in-kernel


@functools.lru_cache(maxsize=None)
def _build_pallas_call(batch: int, n: int):
    tile = _pick_lane_tile(n)
    num_tiles = -(-n // tile)         # cdiv

    grid_spec = pltpu.PrefetchScalarGridSpec(
        num_scalar_prefetch=3,        # orig_len, sqrt_acp, sqrt_1m -> SMEM
        grid=(batch, num_tiles),
        in_specs=[
            pl.BlockSpec((None, TOTAL_DIM, tile), lambda b, i, *_: (b, 0, i)),  # x
            pl.BlockSpec((None, TOTAL_DIM, tile), lambda b, i, *_: (b, 0, i)),  # noise
            pl.BlockSpec((None, AUDIO_DIM, tile), lambda b, i, *_: (b, 0, i)),  # a
            pl.BlockSpec((None, TOTAL_DIM, 1),    lambda b, i, *_: (b, 0, 0)),  # bias
            pl.BlockSpec((TOTAL_DIM, TOTAL_DIM),  lambda b, i, *_: (0, 0)),     # Wx
            pl.BlockSpec((TOTAL_DIM, AUDIO_DIM),  lambda b, i, *_: (0, 0)),     # Wa
        ],
        out_specs=pl.BlockSpec((1, 1), lambda b, i, *_: (0, 0)),                # loss
        scratch_shapes=[pltpu.VMEM((TOTAL_DIM, tile), jnp.float32)],
    )
    return pl.pallas_call(
        _osu_fusion_loss_kernel,
        grid_spec=grid_spec,
        out_shape=jax.ShapeDtypeStruct((1, 1), jnp.float32),
        compiler_params=pltpu.CompilerParams(
            # Both grid axes feed a single scalar accumulator -> reduction axes
            # (sequential).  The kernel is a pure HBM stream, so one TC already
            # runs at the bandwidth roofline; no per-core split needed.
            dimension_semantics=("arbitrary", "arbitrary"),
            vmem_limit_bytes=VMEM_LIMIT_BYTES,
        ),
    )


# ----------------------------------------------------------------------------
# Glue: scheduler tables, randomness, timestep embedding, parameter init.
# ----------------------------------------------------------------------------
def _make_params(key):
    ks = jax.random.split(key, 5)
    scale = 0.1
    return {
        "wx": scale * jax.random.normal(ks[0], (TOTAL_DIM, TOTAL_DIM), jnp.float32),
        "wa": scale * jax.random.normal(ks[1], (TOTAL_DIM, AUDIO_DIM), jnp.float32),
        "wc": scale * jax.random.normal(ks[2], (TOTAL_DIM, CONTEXT_DIM), jnp.float32),
        "wt": scale * jax.random.normal(ks[3], (TOTAL_DIM, TIME_DIM), jnp.float32),
        "bias": scale * jax.random.normal(ks[4], (TOTAL_DIM, 1), jnp.float32),
    }


def _alphas_cumprod():
    betas = jnp.linspace(BETA_START, BETA_END, TRAIN_TIMESTEPS, dtype=jnp.float32)
    return jnp.cumprod(1.0 - betas)


def _timestep_embedding(t):
    half = TIME_DIM // 2
    freqs = jnp.exp(-jnp.log(10000.0) * jnp.arange(half, dtype=jnp.float32) / half)
    args = t.astype(jnp.float32)[:, None] * freqs[None, :]
    return jnp.concatenate([jnp.sin(args), jnp.cos(args)], axis=-1)  # (B, TIME_DIM)


@jax.jit
def _forward_impl(params, x, a, c, key, orig_len):
    b, _, n = x.shape

    k_noise, k_t, k_drop = jax.random.split(key, 3)
    noise = jax.random.normal(k_noise, x.shape, jnp.float32)
    timesteps = jax.random.randint(k_t, (b,), 0, TRAIN_TIMESTEPS, jnp.int32)

    acp = _alphas_cumprod()[timesteps]
    sqrt_acp = jnp.sqrt(acp).astype(jnp.float32)
    sqrt_1m_acp = jnp.sqrt(1.0 - acp).astype(jnp.float32)

    # classifier-free-guidance condition dropout (per sample)
    keep = (jax.random.uniform(k_drop, (b,)) >= COND_DROP_PROB).astype(jnp.float32)
    t_emb = _timestep_embedding(timesteps)                        # (B, TIME_DIM)

    # Per-sample conditioning folded into a tiny (B, C, 1) bias column:
    #   Wc @ c * keep + Wt @ t_emb + bias   (lane-width-1 matmuls stay outside)
    cond = (c @ params["wc"].T) * keep[:, None]                   # (B, C)
    temb = t_emb @ params["wt"].T                                 # (B, C)
    bias_eff = (cond + temb + params["bias"][:, 0][None, :])[:, :, None]

    loss_sum = _build_pallas_call(b, n)(
        orig_len,                              # scalar prefetch (SMEM)
        sqrt_acp,
        sqrt_1m_acp,
        x,                                     # native (B, C, N) f32 — no relayout
        noise,
        a,
        bias_eff.astype(jnp.float32),          # (B, C, 1)
        params["wx"].astype(jnp.bfloat16),     # (C, C) MXU operand
        params["wa"].astype(jnp.bfloat16),     # (C, C)
    )[0, 0]

    # (loss * mask).sum() / mask.sum(); with orig_len == n this equals loss.mean().
    # No clamping: an all-zero mask NaNs exactly like the PyTorch reference.
    mask_sum = jnp.sum(jnp.minimum(orig_len, n).astype(jnp.float32)) * float(TOTAL_DIM)
    return loss_sum / mask_sum


def osu_fusion_forward(params, x, a, c, key, orig_len=None):
    """OsuFusion.forward: returns the scalar diffusion training loss."""
    b, _, n = x.shape
    if orig_len is None:
        orig_len_arr = jnp.full((b,), n, dtype=jnp.int32)  # all-ones mask == mean
    else:
        orig_len_arr = jnp.asarray(orig_len, dtype=jnp.int32)
    return _forward_impl(
        params,
        jnp.asarray(x, jnp.float32),
        jnp.asarray(a, jnp.float32),
        jnp.asarray(c, jnp.float32),
        key,
        orig_len_arr,
    )


if __name__ == "__main__":
    root = jax.random.PRNGKey(0)
    k_params, k_x, k_a, k_c, k_fwd = jax.random.split(root, 5)

    params = _make_params(k_params)
    x = jax.random.normal(k_x, (BATCH, TOTAL_DIM, SEQ_LEN), jnp.float32)
    a = jax.random.normal(k_a, (BATCH, AUDIO_DIM, SEQ_LEN), jnp.float32)
    c = jax.random.normal(k_c, (BATCH, CONTEXT_DIM), jnp.float32)

    # unmasked path (loss.mean())
    loss = osu_fusion_forward(params, x, a, c, k_fwd, orig_len=None)
    jax.block_until_ready(loss)

    # masked path (orig_len provided -> (loss*mask).sum() / mask.sum())
    loss_masked = osu_fusion_forward(params, x, a, c, k_fwd, orig_len=[SEQ_LEN, 96])
    jax.block_until_ready(loss_masked)

    assert jnp.isfinite(loss) and jnp.isfinite(loss_masked)
    print("KERNEL_OK")
</pallas_src>

<mosaic_0001>
module attributes {stable_mosaic.version = 11 : i64} {
  func.func @_osu_fusion_loss_kernel(%arg0: i32, %arg1: i32, %arg2: memref<2xi32, #tpu.memory_space<smem>>, %arg3: memref<2xf32, #tpu.memory_space<smem>>, %arg4: memref<2xf32, #tpu.memory_space<smem>>, %arg5: memref<1x8x128xf32, #tpu.memory_space<vmem>>, %arg6: memref<1x8x128xf32, #tpu.memory_space<vmem>>, %arg7: memref<1x8x128xf32, #tpu.memory_space<vmem>>, %arg8: memref<1x8x1xf32, #tpu.memory_space<vmem>>, %arg9: memref<8x8xbf16, #tpu.memory_space<vmem>>, %arg10: memref<8x8xbf16, #tpu.memory_space<vmem>>, %arg11: memref<1x1xf32, #tpu.memory_space<vmem>>, %arg12: memref<8x128xf32, #tpu.memory_space<vmem>>) attributes {dimension_semantics = [#tpu.dimension_semantics<arbitrary>, #tpu.dimension_semantics<arbitrary>], iteration_bounds = array<i64: 2, 1>, scalar_prefetch = 3 : i64, scratch_operands = 1 : i64, tpu.core_type = #tpu.core_type<tc>, window_params = [{transform_indices = @transform_0, window_bounds = array<i64: 1, 8, 128>}, {transform_indices = @transform_1, window_bounds = array<i64: 1, 8, 128>}, {transform_indices = @transform_2, window_bounds = array<i64: 1, 8, 128>}, {transform_indices = @transform_3, window_bounds = array<i64: 1, 8, 1>}, {pipeline_mode = #tpu.pipeline_mode<synchronous>, transform_indices = @transform_4, window_bounds = array<i64: 8, 8>}, {pipeline_mode = #tpu.pipeline_mode<synchronous>, transform_indices = @transform_5, window_bounds = array<i64: 8, 8>}, {pipeline_mode = #tpu.pipeline_mode<synchronous>, transform_indices = @transform_6, window_bounds = array<i64: 1, 1>}]} {
    %c0_i32 = arith.constant 0 : i32
    %0 = arith.cmpi eq, %arg0, %c0_i32 : i32
    %c0_i32_0 = arith.constant 0 : i32
    %1 = arith.cmpi eq, %arg1, %c0_i32_0 : i32
    %2 = arith.andi %0, %1 : i1
    %3 = arith.extui %2 : i1 to i32
    %c0_i32_1 = arith.constant 0 : i32
    %4 = arith.cmpi ne, %3, %c0_i32_1 : i32
    scf.if %4 {
      %cst_25 = arith.constant 0.000000e+00 : f32
      %51 = vector.broadcast %cst_25 : f32 to vector<8x128xf32>
      %c0_26 = arith.constant 0 : index
      %c0_27 = arith.constant 0 : index
      %52 = vector.load %arg12[%c0_26, %c0_27] : memref<8x128xf32, #tpu.memory_space<vmem>>, vector<8x128xf32>
      tpu.vector_store %arg12[%c0_26, %c0_27], %51 {strides = array<i32>} : memref<8x128xf32, #tpu.memory_space<vmem>>, vector<8x128xf32>,
    } else {
    }
    %5 = arith.index_cast %arg0 : i32 to index
    %6 = memref.load %arg3[%5] : memref<2xf32, #tpu.memory_space<smem>>
    %7 = arith.index_cast %arg0 : i32 to index
    %8 = memref.load %arg4[%7] : memref<2xf32, #tpu.memory_space<smem>>
    %9 = arith.index_cast %arg0 : i32 to index
    %10 = memref.load %arg2[%9] : memref<2xi32, #tpu.memory_space<smem>>
    %c0 = arith.constant 0 : index
    %c0_2 = arith.constant 0 : index
    %c0_3 = arith.constant 0 : index
    %11 = vector.load %arg5[%c0, %c0_2, %c0_3] : memref<1x8x128xf32, #tpu.memory_space<vmem>>, vector<1x8x128xf32>
    %12 = vector.shape_cast %11 : vector<1x8x128xf32> to vector<8x128xf32>
    %c0_4 = arith.constant 0 : index
    %c0_5 = arith.constant 0 : index
    %c0_6 = arith.constant 0 : index
    %13 = vector.load %arg6[%c0_4, %c0_5, %c0_6] : memref<1x8x128xf32, #tpu.memory_space<vmem>>, vector<1x8x128xf32>
    %14 = vector.shape_cast %13 : vector<1x8x128xf32> to vector<8x128xf32>
    %15 = vector.broadcast %6 : f32 to vector<8x128xf32>
    %16 = arith.mulf %15, %12 : vector<8x128xf32>
    %17 = vector.broadcast %8 : f32 to vector<8x128xf32>
    %18 = arith.mulf %17, %14 : vector<8x128xf32>
    %19 = arith.addf %16, %18 : vector<8x128xf32>
    %c0_7 = arith.constant 0 : index
    %c0_8 = arith.constant 0 : index
    %20 = vector.load %arg9[%c0_7, %c0_8] : memref<8x8xbf16, #tpu.memory_space<vmem>>, vector<8x8xbf16>
    %21 = arith.truncf %19 : vector<8x128xf32> to vector<8x128xbf16>
    %cst = arith.constant dense<0.000000e+00> : vector<8x128xf32>
    %22 = tpu.matmul %20, %21, %cst {dimension_numbers = #tpu.dot_dimension_numbers<[1], [0], [0], [1], [0, 0, 1, 1], [], []>} : vector<8x8xbf16>, vector<8x128xbf16>, vector<8x128xf32> -> vector<8x128xf32>
    %c0_9 = arith.constant 0 : index
    %c0_10 = arith.constant 0 : index
    %23 = vector.load %arg10[%c0_9, %c0_10] : memref<8x8xbf16, #tpu.memory_space<vmem>>, vector<8x8xbf16>
    %c0_11 = arith.constant 0 : index
    %c0_12 = arith.constant 0 : index
    %c0_13 = arith.constant 0 : index
    %24 = vector.load %arg7[%c0_11, %c0_12, %c0_13] : memref<1x8x128xf32, #tpu.memory_space<vmem>>, vector<1x8x128xf32>
    %25 = vector.shape_cast %24 : vector<1x8x128xf32> to vector<8x128xf32>
    %26 = arith.truncf %25 : vector<8x128xf32> to vector<8x128xbf16>
    %cst_14 = arith.constant dense<0.000000e+00> : vector<8x128xf32>
    %27 = tpu.matmul %23, %26, %cst_14 {dimension_numbers = #tpu.dot_dimension_numbers<[1], [0], [0], [1], [0, 0, 1, 1], [], []>} : vector<8x8xbf16>, vector<8x128xbf16>, vector<8x128xf32> -> vector<8x128xf32>
    %28 = arith.addf %22, %27 : vector<8x128xf32>
    %c0_15 = arith.constant 0 : index
    %c0_16 = arith.constant 0 : index
    %c0_17 = arith.constant 0 : index
    %29 = vector.load %arg8[%c0_15, %c0_16, %c0_17] : memref<1x8x1xf32, #tpu.memory_space<vmem>>, vector<1x8x1xf32>
    %30 = vector.shape_cast %29 : vector<1x8x1xf32> to vector<8x1xf32>
    %31 = vector.broadcast %30 : vector<8x1xf32> to vector<8x128xf32>
    %32 = arith.addf %28, %31 : vector<8x128xf32>
    %33 = arith.subf %32, %14 : vector<8x128xf32>
    %34 = arith.mulf %33, %33 : vector<8x128xf32>
    %c128_i32 = arith.constant 128 : i32
    %35 = arith.muli %arg1, %c128_i32 : i32
    %36 = tpu.iota {dimensions = array<i32: 1>} : vector<8x128xi32>
    %37 = vector.broadcast %35 : i32 to vector<8x128xi32>
    %38 = arith.addi %37, %36 : vector<8x128xi32>
    %c0_18 = arith.constant 0 : index
    %c0_19 = arith.constant 0 : index
    %39 = vector.load %arg12[%c0_18, %c0_19] : memref<8x128xf32, #tpu.memory_space<vmem>>, vector<8x128xf32>
    %40 = vector.broadcast %10 : i32 to vector<8x128xi32>
    %41 = arith.cmpi slt, %38, %40 : vector<8x128xi32>
    %cst_20 = arith.constant 0.000000e+00 : f32
    %42 = vector.broadcast %cst_20 : f32 to vector<8x128xf32>
    %43 = arith.select %41, %34, %42 : vector<8x128xi1>, vector<8x128xf32>
    %44 = arith.addf %39, %43 : vector<8x128xf32>
    %c0_21 = arith.constant 0 : index
    %c0_22 = arith.constant 0 : index
    %45 = vector.load %arg12[%c0_21, %c0_22] : memref<8x128xf32, #tpu.memory_space<vmem>>, vector<8x128xf32>
    tpu.vector_store %arg12[%c0_21, %c0_22], %44 {strides = array<i32>} : memref<8x128xf32, #tpu.memory_space<vmem>>, vector<8x128xf32>,
    %c1_i32 = arith.constant 1 : i32
    %46 = arith.cmpi eq, %arg0, %c1_i32 : i32
    %c0_i32_23 = arith.constant 0 : i32
    %47 = arith.cmpi eq, %arg1, %c0_i32_23 : i32
    %48 = arith.andi %46, %47 : i1
    %49 = arith.extui %48 : i1 to i32
    %c0_i32_24 = arith.constant 0 : i32
    %50 = arith.cmpi ne, %49, %c0_i32_24 : i32
    scf.if %50 {
      %c0_25 = arith.constant 0 : index
      %c0_26 = arith.constant 0 : index
      %51 = vector.load %arg12[%c0_25, %c0_26] : memref<8x128xf32, #tpu.memory_space<vmem>>, vector<8x128xf32>
      %52 = vector.shape_cast %51 : vector<8x128xf32> to vector<1x8x128xf32>
      %cst_27 = arith.constant dense<0.000000e+00> : vector<1xf32>
      %53 = vector.multi_reduction <add>, %52, %cst_27 [1, 2] : vector<1x8x128xf32> to vector<1xf32>
      %54 = vector.shape_cast %53 : vector<1xf32> to vector<1x1x1xf32>
      %55 = vector.extract %54[0, 0, 0] : f32 from vector<1x1x1xf32>
      %56 = vector.broadcast %55 : f32 to vector<1x1xf32>
      %c0_28 = arith.constant 0 : index
      %c0_29 = arith.constant 0 : index
      %57 = vector.load %arg11[%c0_28, %c0_29] : memref<1x1xf32, #tpu.memory_space<vmem>>, vector<1x1xf32>
      tpu.vector_store %arg11[%c0_28, %c0_29], %56 {strides = array<i32>} : memref<1x1xf32, #tpu.memory_space<vmem>>, vector<1x1xf32>,
    } else {
    }
    return
  }
  func.func @transform_0(%arg0: i32, %arg1: i32, %arg2: memref<2xi32, #tpu.memory_space<smem>>, %arg3: memref<2xf32, #tpu.memory_space<smem>>, %arg4: memref<2xf32, #tpu.memory_space<smem>>) -> (i32, i32, i32) {
    %c0_i32 = arith.constant 0 : i32
    %c0_i32_0 = arith.constant 0 : i32
    return %arg0, %c0_i32, %arg1 : i32, i32, i32
  }
  func.func @transform_1(%arg0: i32, %arg1: i32, %arg2: memref<2xi32, #tpu.memory_space<smem>>, %arg3: memref<2xf32, #tpu.memory_space<smem>>, %arg4: memref<2xf32, #tpu.memory_space<smem>>) -> (i32, i32, i32) {
    %c0_i32 = arith.constant 0 : i32
    %c0_i32_0 = arith.constant 0 : i32
    return %arg0, %c0_i32, %arg1 : i32, i32, i32
  }
  func.func @transform_2(%arg0: i32, %arg1: i32, %arg2: memref<2xi32, #tpu.memory_space<smem>>, %arg3: memref<2xf32, #tpu.memory_space<smem>>, %arg4: memref<2xf32, #tpu.memory_space<smem>>) -> (i32, i32, i32) {
    %c0_i32 = arith.constant 0 : i32
    %c0_i32_0 = arith.constant 0 : i32
    return %arg0, %c0_i32, %arg1 : i32, i32, i32
  }
  func.func @transform_3(%arg0: i32, %arg1: i32, %arg2: memref<2xi32, #tpu.memory_space<smem>>, %arg3: memref<2xf32, #tpu.memory_space<smem>>, %arg4: memref<2xf32, #tpu.memory_space<smem>>) -> (i32, i32, i32) {
    %c0_i32 = arith.constant 0 : i32
    %c0_i32_0 = arith.constant 0 : i32
    %c0_i32_1 = arith.constant 0 : i32
    return %arg0, %c0_i32, %c0_i32_0 : i32, i32, i32
  }
  func.func @transform_4(%arg0: i32, %arg1: i32, %arg2: memref<2xi32, #tpu.memory_space<smem>>, %arg3: memref<2xf32, #tpu.memory_space<smem>>, %arg4: memref<2xf32, #tpu.memory_space<smem>>) -> (i32, i32) {
    %c0_i32 = arith.constant 0 : i32
    %c0_i32_0 = arith.constant 0 : i32
    %c0_i32_1 = arith.constant 0 : i32
    return %c0_i32, %c0_i32_0 : i32, i32
  }
  func.func @transform_5(%arg0: i32, %arg1: i32, %arg2: memref<2xi32, #tpu.memory_space<smem>>, %arg3: memref<2xf32, #tpu.memory_space<smem>>, %arg4: memref<2xf32, #tpu.memory_space<smem>>) -> (i32, i32) {
    %c0_i32 = arith.constant 0 : i32
    %c0_i32_0 = arith.constant 0 : i32
    %c0_i32_1 = arith.constant 0 : i32
    return %c0_i32, %c0_i32_0 : i32, i32
  }
  func.func @transform_6(%arg0: i32, %arg1: i32, %arg2: memref<2xi32, #tpu.memory_space<smem>>, %arg3: memref<2xf32, #tpu.memory_space<smem>>, %arg4: memref<2xf32, #tpu.memory_space<smem>>) -> (i32, i32) {
    %c0_i32 = arith.constant 0 : i32
    %c0_i32_0 = arith.constant 0 : i32
    %c0_i32_1 = arith.constant 0 : i32
    return %c0_i32, %c0_i32_0 : i32, i32
  }
}

</mosaic_0001>

<llo_original>
// kernel: _forward_impl.3
$region0: #{_forward_impl.3}
  #allocation0 [shape = 'u32[]', space=smem, size = 0x4, offset = 0x4, fixed_abs, tag = 'smem constant byte address 0x4 - core index']
  #allocation1 [shape = 'u32[144,128]{1,0:T(1,128)}', space=vmem, size = 0x12000, scoped, tag = 'internal scratch']
  #allocation2 [shape = 'f32[8,128]{1,0:T(8,128)}', space=vmem, size = 0x1000, scoped, tag = 'scratch operand']
  #allocation3 [shape = 's32[1]{0}', space=sflag, size = 0x4, scoped, tag = 'scoped memory for _forward_impl.3']
  #allocation4 [shape = 'u8[512]{0}', space=smem, size = 0x200, scoped, tag = 'prefetched SMEM operand 0']
  #allocation5 [shape = 'u8[512]{0}', space=smem, size = 0x200, scoped, tag = 'prefetched SMEM operand 1']
  #allocation6 [shape = 'u8[512]{0}', space=smem, size = 0x200, scoped, tag = 'prefetched SMEM operand 2']
  %s0 = inlined_call_operand.vmem [shape: s32[2], index: 0, kind: input, shape index: {}]
  %s1 = inlined_call_operand.vmem [shape: f32[2], index: 1, kind: input, shape index: {}]
  %s2 = inlined_call_operand.vmem [shape: f32[2], index: 2, kind: input, shape index: {}]
  %s3 = inlined_call_operand.vmem [shape: f32[2,8,128], index: 3, kind: input, shape index: {}]
  %s4 = inlined_call_operand.vmem [shape: f32[2,8,128], index: 4, kind: input, shape index: {}]
  %s5 = inlined_call_operand.vmem [shape: f32[2,8,128], index: 5, kind: input, shape index: {}]
  %s6 = inlined_call_operand.vmem [shape: f32[2,8,1], index: 6, kind: input, shape index: {}]
  %s7 = inlined_call_operand.vmem [shape: bf16[8,8], index: 7, kind: input, shape index: {}]
  %s8 = inlined_call_operand.vmem [shape: bf16[8,8], index: 8, kind: input, shape index: {}]
  %s9 = inlined_call_operand.hbm [shape: f32[1,1], index: 9, kind: output, shape index: {}]
  %s10 = sld [smem:[#allocation0]]
  $region65: #{_forward_impl.3} parent=0
    _
  %s12 = ssub.s32 1, %s10
  %s13 = scalar_select 0, %s12, %s10
  %s14 = sshll.u32 %s0, 4
  %s15 = int_to_ptr.vmem [resolvable:$true] %s14
  %17 = dma.vmem_to_smem %s15, 16, [#allocation4], [#allocation3]
  %s18 = sshll.u32 %s1, 4
  %s19 = int_to_ptr.vmem [resolvable:$true] %s18
  %21 = dma.vmem_to_smem %s19, 16, [#allocation5], [#allocation3]
  %s22 = sshll.u32 %s2, 4
  %s23 = int_to_ptr.vmem [resolvable:$true] %s22
  %25 = dma.vmem_to_smem %s23, 16, [#allocation6], [#allocation3]
  %26 = dma.done [#allocation3], 48
  %27 = sfence
  $region1: #{_forward_impl.3} parent=0
    #allocation7 [shape = 'u8[512]{0}', space=vmem, size = 0x400, scoped, tag = 'output window, operand 0, single buffered']
    #allocation8 [shape = 's32[2]{0}', space=sflag, size = 0x8, scoped, tag = 'scoped memory for _forward_impl.3']
    %28 = vsyncpa [#allocation8], 0
    loop: start=0, step=1, limit=4
    $region2: #{_forward_impl.3} parent=1 // loop_pre_header
      _
    $region3: #{_forward_impl.3} parent=1 // loop_header
      %s30 = sphi 0, %s34
      %p31 = scmp.ge.s32.totalorder %s30, 4
      %s37 = sphi 0, %s49
      %s38 = sphi 0, %s45
      %s39 = sphi 0, %s37
      %s40 = sphi 0, %s38
      %s41 = sphi 0, %s39
      %s42 = sphi 0, %s40
      %s54 = sphi 0, %s56
      %s57 = sphi 0, %s54
      %s58 = sphi 0, %s57
      %s74 = sphi 0, %s58
      %s82 = sphi 0, %s84
      %s85 = sphi 0, %s82
      %s86 = sphi 0, %s85
      %s102 = sphi 0, %s86
      %s110 = sphi 0, %s112
      %s113 = sphi 0, %s110
      %s114 = sphi 0, %s113
      %s130 = sphi 0, %s114
      %s136 = sphi 0, %s138
      %s139 = sphi 0, %s136
      %s140 = sphi 0, %s139
      %s156 = sphi 0, %s140
      %s160 = sphi 0, %s160
      %s162 = sphi 0, %s160
      %s163 = sphi 0, %s162
      %s177 = sphi 0, %s163
      %s181 = sphi 0, %s181
      %s183 = sphi 0, %s181
      %s184 = sphi 0, %s183
      %s198 = sphi 0, %s184
      %s202 = sphi 0, %s202
      %s204 = sphi 0, %s202
      %s205 = sphi 0, %s204
      %s219 = sphi 0, %s205
    $region4: #{_forward_impl.3} parent=1 // loop_header_branch
      %33 = sbr.rel (%p31) target = $region8
    $region5: #{_forward_impl.3} parent=1 // loop_body
      %s35 = ssub.s32 %s30, 1
      %s36 = ssub.s32 %s30, 2
      %s43 = sadd.s32 1, %s38
      %p44 = scmp.ge.s32.totalorder %s43, 1
      %s45 = scalar_select %p44, 0, %s43
      %s46 = sadd.s32 1, %s37
      %s47 = scalar_select %p44, %s46, %s37
      %p48 = scmp.ge.s32.totalorder %s47, 2
      %s49 = scalar_select %p48, 0, %s47
      %s50 = ssub.s32 %s37, %s49
      %s51 = ssub.s32 %s38, %s45
      %s52 = sor.u32 %s50, %s51
      %p53 = scmp.eq.s32.totalorder %s52, 0
      %s55 = sadd.s32 %s54, 1
      %s56 = scalar_select %p53, %s54, %s55
      %p59 = pneg %p53
      %p60 = scmp.eq.s32.totalorder %s30, 1
      %p61 = por %p59, %p60
      %p62 = scmp.ne.s32.totalorder %s54, %s57
      %p63 = scmp.eq.s32.totalorder %s30, 0
      %p64 = por %p62, %p63
      %p65 = scmp.ne.s32.totalorder %s54, %s57
      %p66 = scmp.eq.s32.totalorder %s35, 1
      %p67 = por %p65, %p66
      %p68 = scmp.ne.s32.totalorder %s57, %s58
      %p69 = scmp.eq.s32.totalorder %s35, 0
      %p70 = por %p68, %p69
      %p71 = scmp.ne.s32.totalorder %s57, %s58
      %p72 = scmp.eq.s32.totalorder %s36, 1
      %p73 = por %p71, %p72
      %p75 = scmp.ne.s32.totalorder %s58, %s74
      %p76 = scmp.eq.s32.totalorder %s36, 0
      %p77 = por %p75, %p76
      %s78 = ssub.s32 %s37, %s49
      %s79 = ssub.s32 %s38, %s45
      %s80 = sor.u32 %s78, %s79
      %p81 = scmp.eq.s32.totalorder %s80, 0
      %s83 = sadd.s32 %s82, 1
      %s84 = scalar_select %p81, %s82, %s83
      %p87 = pneg %p81
      %p88 = scmp.eq.s32.totalorder %s30, 1
      %p89 = por %p87, %p88
      %p90 = scmp.ne.s32.totalorder %s82, %s85
      %p91 = scmp.eq.s32.totalorder %s30, 0
      %p92 = por %p90, %p91
      %p93 = scmp.ne.s32.totalorder %s82, %s85
      %p94 = scmp.eq.s32.totalorder %s35, 1
      %p95 = por %p93, %p94
      %p96 = scmp.ne.s32.totalorder %s85, %s86
      %p97 = scmp.eq.s32.totalorder %s35, 0
      %p98 = por %p96, %p97
      %p99 = scmp.ne.s32.totalorder %s85, %s86
      %p100 = scmp.eq.s32.totalorder %s36, 1
      %p101 = por %p99, %p100
      %p103 = scmp.ne.s32.totalorder %s86, %s102
      %p104 = scmp.eq.s32.totalorder %s36, 0
      %p105 = por %p103, %p104
      %s106 = ssub.s32 %s37, %s49
      %s107 = ssub.s32 %s38, %s45
      %s108 = sor.u32 %s106, %s107
      %p109 = scmp.eq.s32.totalorder %s108, 0
      %s111 = sadd.s32 %s110, 1
      %s112 = scalar_select %p109, %s110, %s111
      %p115 = pneg %p109
      %p116 = scmp.eq.s32.totalorder %s30, 1
      %p117 = por %p115, %p116
      %p118 = scmp.ne.s32.totalorder %s110, %s113
      %p119 = scmp.eq.s32.totalorder %s30, 0
      %p120 = por %p118, %p119
      %p121 = scmp.ne.s32.totalorder %s110, %s113
      %p122 = scmp.eq.s32.totalorder %s35, 1
      %p123 = por %p121, %p122
      %p124 = scmp.ne.s32.totalorder %s113, %s114
      %p125 = scmp.eq.s32.totalorder %s35, 0
      %p126 = por %p124, %p125
      %p127 = scmp.ne.s32.totalorder %s113, %s114
      %p128 = scmp.eq.s32.totalorder %s36, 1
      %p129 = por %p127, %p128
      %p131 = scmp.ne.s32.totalorder %s114, %s130
      %p132 = scmp.eq.s32.totalorder %s36, 0
      %p133 = por %p131, %p132
      %s134 = ssub.s32 %s37, %s49
      %p135 = scmp.eq.s32.totalorder %s134, 0
      %s137 = sadd.s32 %s136, 1
      %s138 = scalar_select %p135, %s136, %s137
      %p141 = pneg %p135
      %p142 = scmp.eq.s32.totalorder %s30, 1
      %p143 = por %p141, %p142
      %p144 = scmp.ne.s32.totalorder %s136, %s139
      %p145 = scmp.eq.s32.totalorder %s30, 0
      %p146 = por %p144, %p145
      %p147 = scmp.ne.s32.totalorder %s136, %s139
      %p148 = scmp.eq.s32.totalorder %s35, 1
      %p149 = por %p147, %p148
      %p150 = scmp.ne.s32.totalorder %s139, %s140
      %p151 = scmp.eq.s32.totalorder %s35, 0
      %p152 = por %p150, %p151
      %p153 = scmp.ne.s32.totalorder %s139, %s140
      %p154 = scmp.eq.s32.totalorder %s36, 1
      %p155 = por %p153, %p154
      %p157 = scmp.ne.s32.totalorder %s140, %s156
      %p158 = scmp.eq.s32.totalorder %s36, 0
      %p159 = por %p157, %p158
      %s161 = sadd.s32 %s160, 1
      %p164 = scmp.eq.s32.totalorder %s30, 1
      %p165 = scmp.ne.s32.totalorder %s160, %s162
      %p166 = scmp.eq.s32.totalorder %s30, 0
      %p167 = por %p165, %p166
      %p168 = scmp.ne.s32.totalorder %s160, %s162
      %p169 = scmp.eq.s32.totalorder %s35, 1
      %p170 = por %p168, %p169
      %p171 = scmp.ne.s32.totalorder %s162, %s163
      %p172 = scmp.eq.s32.totalorder %s35, 0
      %p173 = por %p171, %p172
      %p174 = scmp.ne.s32.totalorder %s162, %s163
      %p175 = scmp.eq.s32.totalorder %s36, 1
      %p176 = por %p174, %p175
      %p178 = scmp.ne.s32.totalorder %s163, %s177
      %p179 = scmp.eq.s32.totalorder %s36, 0
      %p180 = por %p178, %p179
      %s182 = sadd.s32 %s181, 1
      %p185 = scmp.eq.s32.totalorder %s30, 1
      %p186 = scmp.ne.s32.totalorder %s181, %s183
      %p187 = scmp.eq.s32.totalorder %s30, 0
      %p188 = por %p186, %p187
      %p189 = scmp.ne.s32.totalorder %s181, %s183
      %p190 = scmp.eq.s32.totalorder %s35, 1
      %p191 = por %p189, %p190
      %p192 = scmp.ne.s32.totalorder %s183, %s184
      %p193 = scmp.eq.s32.totalorder %s35, 0
      %p194 = por %p192, %p193
      %p195 = scmp.ne.s32.totalorder %s183, %s184
      %p196 = scmp.eq.s32.totalorder %s36, 1
      %p197 = por %p195, %p196
      %p199 = scmp.ne.s32.totalorder %s184, %s198
      %p200 = scmp.eq.s32.totalorder %s36, 0
      %p201 = por %p199, %p200
      %s203 = sadd.s32 %s202, 1
      %p206 = scmp.eq.s32.totalorder %s30, 1
      %p207 = scmp.ne.s32.totalorder %s202, %s204
      %p208 = scmp.eq.s32.totalorder %s30, 0
      %p209 = por %p207, %p208
      %p210 = scmp.ne.s32.totalorder %s202, %s204
      %p211 = scmp.eq.s32.totalorder %s35, 1
      %p212 = por %p210, %p211
      %p213 = scmp.ne.s32.totalorder %s204, %s205
      %p214 = scmp.eq.s32.totalorder %s35, 0
      %p215 = por %p213, %p214
      %p216 = scmp.ne.s32.totalorder %s204, %s205
      %p217 = scmp.eq.s32.totalorder %s36, 1
      %p218 = por %p216, %p217
      %p220 = scmp.ne.s32.totalorder %s205, %s219
      %p221 = scmp.eq.s32.totalorder %s36, 0
      %p222 = por %p220, %p221
      %p223 = scmp.le.s32.totalorder 1, %s30
      %p224 = scmp.lt.s32.totalorder %s30, 3
      %p225 = pnand %p223, %p224
      %p226 = pneg %p225
      // Predicated region
      $region9: #{_forward_impl.3} parent=5 // pred_check
        _
      $region10: #{_forward_impl.3} parent=5 // pred_check_branch
        %228 = sbr.rel (%p225) target = $region12
      $region11: #{_forward_impl.3} parent=5 // pred_region
        %s229 = ssub.s32 %s30, 1
        // Predicated region
        $region13: #{_forward_impl.3} parent=11 // pred_check
          %p230 = pneg %p173
        $region14: #{_forward_impl.3} parent=11 // pred_check_branch
          %232 = sbr.rel (%p230) target = $region16
        $region15: #{_forward_impl.3} parent=11 // pred_region
          _
        $region16: #{_forward_impl.3} parent=11 // pred_fallthru
          _
        // Predicated region
        $region17: #{_forward_impl.3} parent=11 // pred_check
          %p233 = pneg %p194
        $region18: #{_forward_impl.3} parent=11 // pred_check_branch
          %235 = sbr.rel (%p233) target = $region20
        $region19: #{_forward_impl.3} parent=11 // pred_region
          _
        $region20: #{_forward_impl.3} parent=11 // pred_fallthru
          _
      $region12: #{_forward_impl.3} parent=5 // pred_fallthru
        _
      %p236 = scmp.lt.s32.totalorder %s30, 2
      // Predicated region
      $region21: #{_forward_impl.3} parent=5 // pred_check
        %p237 = pneg %p236
      $region22: #{_forward_impl.3} parent=5 // pred_check_branch
        %239 = sbr.rel (%p237) target = $region24
      $region23: #{_forward_impl.3} parent=5 // pred_region
        // Predicated region
        $region25: #{_forward_impl.3} parent=23 // pred_check
          %p240 = pneg %p64
        $region26: #{_forward_impl.3} parent=23 // pred_check_branch
          %242 = sbr.rel (%p240) target = $region28
        $region27: #{_forward_impl.3} parent=23 // pred_region
          %p243 = scmp.lt.s32.totalorder %s37, 1
          %s244 = scalar_select %p243, %s37, 1
          %p245 = scmp.lt.s32.totalorder %s38, 0
          %s246 = scalar_select %p245, %s38, 0
          %s247 = sadd.s32 %s246, %s244
          %s248 = smul.addr %s247, 8
          %s249 = scalar_lea.vmem %s3, %s248
        $region28: #{_forward_impl.3} parent=23 // pred_fallthru
          _
        // Predicated region
        $region29: #{_forward_impl.3} parent=23 // pred_check
          %p250 = pneg %p92
        $region30: #{_forward_impl.3} parent=23 // pred_check_branch
          %252 = sbr.rel (%p250) target = $region32
        $region31: #{_forward_impl.3} parent=23 // pred_region
          %p253 = scmp.lt.s32.totalorder %s37, 1
          %s254 = scalar_select %p253, %s37, 1
          %p255 = scmp.lt.s32.totalorder %s38, 0
          %s256 = scalar_select %p255, %s38, 0
          %s257 = sadd.s32 %s256, %s254
          %s258 = smul.addr %s257, 8
          %s259 = scalar_lea.vmem %s4, %s258
        $region32: #{_forward_impl.3} parent=23 // pred_fallthru
          _
        // Predicated region
        $region33: #{_forward_impl.3} parent=23 // pred_check
          %p260 = pneg %p120
        $region34: #{_forward_impl.3} parent=23 // pred_check_branch
          %262 = sbr.rel (%p260) target = $region36
        $region35: #{_forward_impl.3} parent=23 // pred_region
          %p263 = scmp.lt.s32.totalorder %s37, 1
          %s264 = scalar_select %p263, %s37, 1
          %p265 = scmp.lt.s32.totalorder %s38, 0
          %s266 = scalar_select %p265, %s38, 0
          %s267 = sadd.s32 %s266, %s264
          %s268 = smul.addr %s267, 8
          %s269 = scalar_lea.vmem %s5, %s268
        $region36: #{_forward_impl.3} parent=23 // pred_fallthru
          _
        // Predicated region
        $region37: #{_forward_impl.3} parent=23 // pred_check
          %p270 = pneg %p146
        $region38: #{_forward_impl.3} parent=23 // pred_check_branch
          %272 = sbr.rel (%p270) target = $region40
        $region39: #{_forward_impl.3} parent=23 // pred_region
          %p273 = scmp.lt.s32.totalorder %s37, 1
          %s274 = scalar_select %p273, %s37, 1
          %s275 = smul.addr %s274, 8
          %s276 = scalar_lea.vmem %s6, %s275
        $region40: #{_forward_impl.3} parent=23 // pred_fallthru
          _
      $region24: #{_forward_impl.3} parent=5 // pred_fallthru
        _
      %p277 = scmp.le.s32.totalorder 1, %s30
      %p278 = scmp.lt.s32.totalorder %s30, 3
      %p279 = pnand %p277, %p278
      %p280 = pneg %p279
      // Predicated region
      $region41: #{_forward_impl.3} parent=5 // pred_check
        _
      $region42: #{_forward_impl.3} parent=5 // pred_check_branch
        %282 = sbr.rel (%p279) target = $region44
      $region43: #{_forward_impl.3} parent=5 // pred_region
        %s283 = ssub.s32 %s30, 1
        %p284 = scmp.lt.s32.totalorder %s39, 1
        %s285 = scalar_select %p284, %s39, 1
        %p286 = scmp.lt.s32.totalorder %s40, 0
        %s287 = scalar_select %p286, %s40, 0
        %s288 = sadd.s32 %s287, %s285
        %s289 = smul.addr %s288, 8
        %s290 = scalar_lea.vmem %s3, %s289
        %p291 = pneg %p70
        %p292 = pneg %p67
        %p293 = scmp.lt.s32.totalorder %s39, 1
        %s294 = scalar_select %p293, %s39, 1
        %p295 = scmp.lt.s32.totalorder %s40, 0
        %s296 = scalar_select %p295, %s40, 0
        %s297 = sadd.s32 %s296, %s294
        %s298 = smul.addr %s297, 8
        %s299 = scalar_lea.vmem %s4, %s298
        %p300 = pneg %p98
        %p301 = pneg %p95
        %p302 = scmp.lt.s32.totalorder %s39, 1
        %s303 = scalar_select %p302, %s39, 1
        %p304 = scmp.lt.s32.totalorder %s40, 0
        %s305 = scalar_select %p304, %s40, 0
        %s306 = sadd.s32 %s305, %s303
        %s307 = smul.addr %s306, 8
        %s308 = scalar_lea.vmem %s5, %s307
        %p309 = pneg %p126
        %p310 = pneg %p123
        %p311 = scmp.lt.s32.totalorder %s39, 1
        %s312 = scalar_select %p311, %s39, 1
        %s313 = smul.addr %s312, 8
        %s314 = scalar_lea.vmem %s6, %s313
        %p315 = pneg %p152
        %p316 = pneg %p149
        %p317 = pneg %p173
        %p318 = pneg %p170
        %p319 = pneg %p194
        %p320 = pneg %p191
        %p321 = pneg %p215
        %p322 = pneg %p212
        %p323 = scmp.lt.s32.totalorder %s39, 1
        %s324 = scalar_select %p323, %s39, 1
        %p325 = scmp.lt.s32.totalorder %s40, 0
        %s326 = scalar_select %p325, %s40, 0
        %s327 = sadd.s32 %s326, %s324
        %s328 = smul.addr %s327, 8
        %s329 = scalar_lea.vmem %s3, %s328
        %p330 = scmp.lt.s32.totalorder %s39, 1
        %s331 = scalar_select %p330, %s39, 1
        %p332 = scmp.lt.s32.totalorder %s40, 0
        %s333 = scalar_select %p332, %s40, 0
        %s334 = sadd.s32 %s333, %s331
        %s335 = smul.addr %s334, 8
        %s336 = scalar_lea.vmem %s4, %s335
        %p337 = scmp.lt.s32.totalorder %s39, 1
        %s338 = scalar_select %p337, %s39, 1
        %p339 = scmp.lt.s32.totalorder %s40, 0
        %s340 = scalar_select %p339, %s40, 0
        %s341 = sadd.s32 %s340, %s338
        %s342 = smul.addr %s341, 8
        %s343 = scalar_lea.vmem %s5, %s342
        %p344 = scmp.lt.s32.totalorder %s39, 1
        %s345 = scalar_select %p344, %s39, 1
        %s346 = smul.addr %s345, 8
        %s347 = scalar_lea.vmem %s6, %s346
        %p349 = scmp.eq.s32.totalorder %s39, 0
        %p350 = scmp.eq.s32.totalorder %s40, 0
        %p351 = pnand %p349, %p350
        %p352 = pneg %p351
        // Predicated region
        $region45: #{_forward_impl.3} parent=43 // pred_check
          _
        $region46: #{_forward_impl.3} parent=43 // pred_check_branch
          %354 = sbr.rel (%p351) target = $region48
        $region47: #{_forward_impl.3} parent=43 // pred_region
          %355 = vst [vmem:[#allocation2] sm:$0xff] 0.0
        $region48: #{_forward_impl.3} parent=43 // pred_fallthru
          _
        %s356 = sld [smem:[#allocation5 + %s39]]
        %s357 = sld [smem:[#allocation6 + %s39]]
        %s358 = sld [smem:[#allocation4 + %s39]]
        %v359 = vld [vmem:[%s329] sm:$0xff]
        %v360 = vld [vmem:[%s336] sm:$0xff]
        %v361 = vstv %s356
        %v362 = vmul.f32 %v361, %v359
        %v363 = vstv %s357
        %v364 = vmul.f32 %v363, %v360
        %v365 = vadd.f32 %v362, %v364
        %v366 = vld [vmem:[%s7] sm:$0xf]
        %v367 = vpack.c.bf16 %v365, %v365
        %v368 = vld [vmem:[%s8] sm:$0xf]
        %v369 = vld [vmem:[%s343] sm:$0xff]
        %v370 = vpack.c.bf16 %v369, %v369
        %vm371 = vcmask 64512
        %v373 = vsel %vm371, %v368, 0
        %vm375 = vcmask 1043456
        %v377 = vsel %vm375, %v370, 0
        %379 = vmatprep.subr.bf16.mxu0 0
        %380 = vmatpush1.bf16.msra.mxu0 %v377
        %381 = vmatprep.subr.bf16.mxu0 0
        %382 = vmatpush1.bf16.msra.mxu0 0
        %383 = vmatprep.subr.bf16.mxu0 0
        %384 = vmatpush1.bf16.msra.mxu0 0
        %385 = vmatprep.subr.bf16.mxu0 0
        %386 = vmatpush1.bf16.msra.mxu0 0
        %387 = vmatprep.subr.bf16.mxu0 0
        %388 = vmatpush1.bf16.msra.mxu0 0
        %389 = vmatprep.subr.bf16.mxu0 0
        %390 = vmatpush1.bf16.msra.mxu0 0
        %391 = vmatprep.subr.bf16.mxu0 0
        %392 = vmatpush1.bf16.msra.mxu0 0
        %393 = vmatprep.subr.bf16.mxu0 0
        %394 = vmatpush1.bf16.msra.mxu0 0
        %395 = vmatprep.subr.bf16.mxu0 0
        %396 = vmatpush1.bf16.msra.mxu0 0
        %397 = vmatprep.subr.bf16.mxu0 0
        %398 = vmatpush1.bf16.msra.mxu0 0
        %399 = vmatprep.subr.bf16.mxu0 0
        %400 = vmatpush1.bf16.msra.mxu0 0
        %401 = vmatprep.subr.bf16.mxu0 0
        %402 = vmatpush1.bf16.msra.mxu0 0
        %403 = vmatprep.subr.bf16.mxu0 0
        %404 = vmatpush1.bf16.msra.mxu0 0
        %405 = vmatprep.subr.bf16.mxu0 0
        %406 = vmatpush1.bf16.msra.mxu0 0
        %407 = vmatprep.subr.bf16.mxu0 0
        %408 = vmatpush1.bf16.msra.mxu0 0
        %409 = vmatprep.subr.bf16.mxu0 0
        %410 = vmatpush1.bf16.msra.mxu0 0
        %411 = vmatprep.mubr.bf16.mxu0 0
        %412 = vmatmul.mubr.bf16.gmra.mrb[0].mxu0 %v373
        %v413 = vpop.f32.mrb[0].mxu0
        %v414 = vadd.f32 0.0, %v413
        %v415 = vpop.f32.mrb[0].mxu0
        %v416 = vpop.f32.mrb[0].mxu0
        %v417 = vpop.f32.mrb[0].mxu0
        %418 = vdwg.mxu0
        %v420 = vsel %vm371, %v366, 0
        %v423 = vsel %vm375, %v367, 0
        %425 = vmatprep.subr.bf16.mxu0 0
        %426 = vmatpush1.bf16.msra.mxu0 %v423
        %427 = vmatprep.subr.bf16.mxu0 0
        %428 = vmatpush1.bf16.msra.mxu0 0
        %429 = vmatprep.subr.bf16.mxu0 0
        %430 = vmatpush1.bf16.msra.mxu0 0
        %431 = vmatprep.subr.bf16.mxu0 0
        %432 = vmatpush1.bf16.msra.mxu0 0
        %433 = vmatprep.subr.bf16.mxu0 0
        %434 = vmatpush1.bf16.msra.mxu0 0
        %435 = vmatprep.subr.bf16.mxu0 0
        %436 = vmatpush1.bf16.msra.mxu0 0
        %437 = vmatprep.subr.bf16.mxu0 0
        %438 = vmatpush1.bf16.msra.mxu0 0
        %439 = vmatprep.subr.bf16.mxu0 0
        %440 = vmatpush1.bf16.msra.mxu0 0
        %441 = vmatprep.subr.bf16.mxu0 0
        %442 = vmatpush1.bf16.msra.mxu0 0
        %443 = vmatprep.subr.bf16.mxu0 0
        %444 = vmatpush1.bf16.msra.mxu0 0
        %445 = vmatprep.subr.bf16.mxu0 0
        %446 = vmatpush1.bf16.msra.mxu0 0
        %447 = vmatprep.subr.bf16.mxu0 0
        %448 = vmatpush1.bf16.msra.mxu0 0
        %449 = vmatprep.subr.bf16.mxu0 0
        %450 = vmatpush1.bf16.msra.mxu0 0
        %451 = vmatprep.subr.bf16.mxu0 0
        %452 = vmatpush1.bf16.msra.mxu0 0
        %453 = vmatprep.subr.bf16.mxu0 0
        %454 = vmatpush1.bf16.msra.mxu0 0
        %455 = vmatprep.subr.bf16.mxu0 0
        %456 = vmatpush1.bf16.msra.mxu0 0
        %457 = vmatprep.mubr.bf16.mxu0 0
        %458 = vmatmul.mubr.bf16.gmra.mrb[0].mxu0 %v420
        %v459 = vpop.f32.mrb[0].mxu0
        %v460 = vadd.f32 %v414, %v459
        %v461 = vpop.f32.mrb[0].mxu0
        %v462 = vpop.f32.mrb[0].mxu0
        %v463 = vpop.f32.mrb[0].mxu0
        %464 = vdwg.mxu0
        %v465 = vld [vmem:[%s347] sm:$0xff]
        %467 = vset.pattern.permute.xlu0 0
        %468 = vperm.xlu0 %467, %v465
        %v469 = vpop.permute.xlu0 %468
        %v471 = vadd.f32 %v460, %v469
        %v472 = vsub.f32 %v471, %v360
        %v473 = vmul.f32 %v472, %v472
        %s474 = smul.u32 %s40, 128
        %v475 = vlaneseq
        %v476 = vand.u32 %v475, 127
        %v477 = vstv %s474
        %v478 = vadd.s32 %v477, %v476
        %v479 = vld [vmem:[#allocation2] sm:$0xff]
        %v480 = vstv %s358
        %vm481 = vcmp.lt.s32.totalorder %v478, %v480
        %v482 = vsel %vm481, %v473, 0.0
        %v483 = vadd.f32 %v479, %v482
        %484 = vst [vmem:[#allocation2] sm:$0xff] %v483
        %p485 = scmp.eq.s32.totalorder %s39, 1
        %p486 = pnand %p485, %p350
        %p487 = pneg %p486
        // Predicated region
        $region49: #{_forward_impl.3} parent=43 // pred_check
          _
        $region50: #{_forward_impl.3} parent=43 // pred_check_branch
          %489 = sbr.rel (%p486) target = $region52
        $region51: #{_forward_impl.3} parent=43 // pred_region
          %v490 = vld [vmem:[#allocation2] sm:$0xff]
          %491 = vadd.xlane.f32.xlu0 %v490
          %v492 = vpop.xlane.xlu0 %491
          %v493 = vrot.slane %v492, 4
          %v494 = vadd.f32 %v492, %v493
          %v495 = vrot.slane %v494, 2
          %v496 = vadd.f32 %v494, %v495
          %v497 = vrot.slane %v496, 1
          %v498 = vadd.f32 %v496, %v497
          %s499 = vtos %v498
          %v500 = vstv %s499
          %vm501 = vcmask 0
          %502 = vst.msk [vmem:[#allocation7] sm:$0x1] %vm501, %v500
        $region52: #{_forward_impl.3} parent=43 // pred_fallthru
          _
        // Predicated region
        $region53: #{_forward_impl.3} parent=43 // pred_check
          %p503 = pneg %p212
        $region54: #{_forward_impl.3} parent=43 // pred_check_branch
          %505 = sbr.rel (%p503) target = $region56
        $region55: #{_forward_impl.3} parent=43 // pred_region
          %s507 = ssub.s32 16, 16
          %508 = vsyncadd [#allocation8], %s507
          %s510 = sshll.u32 [#allocation7], 4
          %s511 = int_to_ptr.vmem [resolvable:$true] %s510
          %513 = dma.vmem_to_hbm [thread:$0]  %s511, 16, %s9, [#allocation8]
        $region56: #{_forward_impl.3} parent=43 // pred_fallthru
          _
        // Predicated region
        $region57: #{_forward_impl.3} parent=43 // pred_check
          %p514 = pneg %p212
        $region58: #{_forward_impl.3} parent=43 // pred_check_branch
          %516 = sbr.rel (%p514) target = $region60
        $region59: #{_forward_impl.3} parent=43 // pred_region
          %517 = dma.done [#allocation8], 16
        $region60: #{_forward_impl.3} parent=43 // pred_fallthru
          _
      $region44: #{_forward_impl.3} parent=5 // pred_fallthru
        _
      %p518 = scmp.le.s32.totalorder 2, %s30
      // Predicated region
      $region61: #{_forward_impl.3} parent=5 // pred_check
        %p519 = pneg %p518
      $region62: #{_forward_impl.3} parent=5 // pred_check_branch
        %521 = sbr.rel (%p519) target = $region64
      $region63: #{_forward_impl.3} parent=5 // pred_region
        %s522 = ssub.s32 %s30, 2
      $region64: #{_forward_impl.3} parent=5 // pred_fallthru
        _
    $region6: #{_forward_impl.3} parent=1 // loop_footer
      %s34 = sadd.s32 1, %s30
    $region7: #{_forward_impl.3} parent=1 // loop_footer_branch
      %29 = sbr.rel target = $region3
    $region8: #{_forward_impl.3} parent=1 // loop_exit
      _
    %523 = vsyncpa [#allocation8], 1
    %s524 = scalar_lea.sflag [#allocation8], 1
    %525 = vsyncpa %s524, 1

</llo_original>
